<compile_context>
chip_gen: v7x
topology: tpu7x:2x2x1
jax: 0.10.0
libtpu: 0.0.40
codegen_flags: <defaults>
</compile_context>

<pallas_src>
import jax
import jax.numpy as jnp
from jax.experimental import pallas as pl
from jax.experimental.pallas import tpu as pltpu

IN_FEATURES = 2    # Net._inputN
OUT_FEATURES = 3   # Net._outputM
LANE = 128         # vreg lane width
SUBLANE = 8        # vreg sublane count (f32)


def _round_up(x, m):
    return (x + m - 1) // m * m


def linear_kernel(w_ref, b_ref, x_ref, o_ref):
    """o[j] = w[j,0]*x[0] + w[j,1]*x[1] + b[j], on dense (rows, 128) slabs.

    w_ref: SMEM (OUT*IN,)  -- torch weight (OUT, IN), row-major flattened
    b_ref: SMEM (OUT,)
    x_ref: VMEM (IN, rows, 128)   -- sublane+lane dense batch tile
    o_ref: VMEM (OUT, rows, 128)
    """
    x0 = x_ref[0]            # (rows, 128)
    x1 = x_ref[1]            # (rows, 128)
    for j in range(OUT_FEATURES):   # unrolled: 6 VPU FMAs + 3 dense stores
        o_ref[j] = (w_ref[IN_FEATURES * j] * x0
                    + w_ref[IN_FEATURES * j + 1] * x1
                    + b_ref[j]).astype(o_ref.dtype)


def linear_feature_major(xt, w, b, *, rows_per_tile=1024):
    """Feature-major Linear(2 -> 3): xt (2, N) -> (3, N).

    Preferred entry point: no boundary transposes, so end-to-end HBM traffic
    is just the kernel's own ~20 B/point stream. `rows_per_tile` counts
    128-lane rows (1024 rows == 131072 points per grid step).
    """
    in_f, n = xt.shape
    assert in_f == IN_FEATURES

    # --- tile selection (sublane-dense 3-D layout) -------------------------
    rows_total = pl.cdiv(max(n, 1), LANE)
    if rows_total < 2 * SUBLANE:
        # Tiny batch: one block equal to the full row extent (no /8 rule).
        rows_block = rows_total
    else:
        # Keep >= 2 tiles so both v7x TensorCores get work; blocks /8-aligned.
        rows_block = min(_round_up(rows_per_tile, SUBLANE),
                         _round_up(pl.cdiv(rows_total, 2), SUBLANE))
    rows_padded = _round_up(rows_total, rows_block)
    num_tiles = rows_padded // rows_block
    n_lanes = rows_padded * LANE

    # --- pack inputs --------------------------------------------------------
    if n_lanes != n:
        xt = jnp.pad(xt, ((0, 0), (0, n_lanes - n)))   # zero tail, sliced off
    x3 = xt.reshape(IN_FEATURES, rows_padded, LANE)     # contiguous reshape
    w_flat = w.reshape(-1).astype(jnp.float32)          # (6,)  -> SMEM
    b_flat = b.reshape(-1).astype(jnp.float32)          # (3,)  -> SMEM

    bytes_per_tile = (IN_FEATURES + OUT_FEATURES) * rows_block * LANE * 4
    cost = pl.CostEstimate(
        flops=2 * IN_FEATURES * OUT_FEATURES * n_lanes,
        transcendentals=0,
        bytes_accessed=(IN_FEATURES + OUT_FEATURES) * n_lanes * x3.dtype.itemsize,
    )

    out3 = pl.pallas_call(
        linear_kernel,
        out_shape=jax.ShapeDtypeStruct((OUT_FEATURES, rows_padded, LANE), xt.dtype),
        grid=(num_tiles,),
        in_specs=[
            pl.BlockSpec(memory_space=pltpu.MemorySpace.SMEM),   # weights
            pl.BlockSpec(memory_space=pltpu.MemorySpace.SMEM),   # bias
            pl.BlockSpec((IN_FEATURES, rows_block, LANE), lambda i: (0, i, 0)),
        ],
        out_specs=pl.BlockSpec((OUT_FEATURES, rows_block, LANE),
                               lambda i: (0, i, 0)),
        compiler_params=pltpu.CompilerParams(
            dimension_semantics=("parallel",),                   # megacore shard
            vmem_limit_bytes=min(max(4 * bytes_per_tile, 8 << 20), 64 << 20),
        ),
        cost_estimate=cost,
    )(w_flat, b_flat, x3)

    return out3.reshape(OUT_FEATURES, n_lanes)[:, :n]


def net_forward(x, w, b, *, rows_per_tile=1024):
    """Drop-in Net.forward semantics: x (N, 2) -> (N, 3)  (== x @ w.T + b).

    The two transposes here are wrapper-side XLA passes over the full arrays;
    large-N callers should use `linear_feature_major` directly with (2, N)
    inputs to avoid that extra HBM traffic.
    """
    out_t = linear_feature_major(x.T, w, b, rows_per_tile=rows_per_tile)
    return out_t.T


if __name__ == "__main__":
    key = jax.random.PRNGKey(0)
    k_x, k_w, k_b = jax.random.split(key, 3)

    # Deterministic parameters mimicking nn.Linear's uniform(-k, k), k=1/sqrt(in)
    bound = 1.0 / jnp.sqrt(jnp.float32(IN_FEATURES))
    w = jax.random.uniform(k_w, (OUT_FEATURES, IN_FEATURES), dtype=jnp.float32,
                           minval=-bound, maxval=bound)
    b = jax.random.uniform(k_b, (OUT_FEATURES,), dtype=jnp.float32,
                           minval=-bound, maxval=bound)

    # Small coordinate grid like allCoords in the PyTorch module: 16x16 points.
    xs = jnp.linspace(-1.0, 1.0, 16, dtype=jnp.float32)
    gx, gy = jnp.meshgrid(xs, xs)
    coords = jnp.stack([gx.ravel(), gy.ravel()], axis=1)        # (256, 2)
    out_small = jax.block_until_ready(net_forward(coords, w, b))
    ref_small = coords @ w.T + b
    assert out_small.shape == (256, OUT_FEATURES)
    assert jnp.allclose(out_small, ref_small, atol=1e-5, rtol=1e-5)

    # Feature-major path (preferred API): ragged N, several pipelined tiles
    # (N=5000 -> 40 rows of 128 lanes, rows_per_tile=8 -> grid=(5,)).
    x_big = jax.random.normal(k_x, (IN_FEATURES, 5000), dtype=jnp.float32)
    out_big = jax.block_until_ready(
        linear_feature_major(x_big, w, b, rows_per_tile=8))
    ref_big = w @ x_big + b[:, None]
    assert out_big.shape == (OUT_FEATURES, 5000)
    assert jnp.allclose(out_big, ref_big, atol=1e-5, rtol=1e-5)

    print("KERNEL_OK")
</pallas_src>

<mosaic_0001>
module attributes {stable_mosaic.version = 11 : i64} {
  func.func @linear_kernel(%arg0: i32, %arg1: memref<6xf32, #tpu.memory_space<smem>>, %arg2: memref<3xf32, #tpu.memory_space<smem>>, %arg3: memref<2x2x128xf32, #tpu.memory_space<vmem>>, %arg4: memref<3x2x128xf32, #tpu.memory_space<vmem>>) attributes {dimension_semantics = [#tpu.dimension_semantics<parallel>], iteration_bounds = array<i64: 1>, scalar_prefetch = 0 : i64, scratch_operands = 0 : i64, tpu.core_type = #tpu.core_type<tc>, window_params = [{transform_indices = @transform_0, window_bounds = array<i64: 6>}, {transform_indices = @transform_1, window_bounds = array<i64: 3>}, {transform_indices = @transform_2, window_bounds = array<i64: 2, 2, 128>}, {transform_indices = @transform_3, window_bounds = array<i64: 3, 2, 128>}]} {
    %c0 = arith.constant 0 : index
    %c0_0 = arith.constant 0 : index
    %c0_1 = arith.constant 0 : index
    %0 = vector.load %arg3[%c0, %c0_0, %c0_1] : memref<2x2x128xf32, #tpu.memory_space<vmem>>, vector<1x2x128xf32>
    %1 = vector.shape_cast %0 : vector<1x2x128xf32> to vector<2x128xf32>
    %c1 = arith.constant 1 : index
    %c0_2 = arith.constant 0 : index
    %c0_3 = arith.constant 0 : index
    %2 = vector.load %arg3[%c1, %c0_2, %c0_3] : memref<2x2x128xf32, #tpu.memory_space<vmem>>, vector<1x2x128xf32>
    %3 = vector.shape_cast %2 : vector<1x2x128xf32> to vector<2x128xf32>
    %c0_4 = arith.constant 0 : index
    %4 = memref.load %arg1[%c0_4] : memref<6xf32, #tpu.memory_space<smem>>
    %5 = vector.broadcast %4 : f32 to vector<2x128xf32>
    %6 = arith.mulf %5, %1 : vector<2x128xf32>
    %c1_5 = arith.constant 1 : index
    %7 = memref.load %arg1[%c1_5] : memref<6xf32, #tpu.memory_space<smem>>
    %8 = vector.broadcast %7 : f32 to vector<2x128xf32>
    %9 = arith.mulf %8, %3 : vector<2x128xf32>
    %10 = arith.addf %6, %9 : vector<2x128xf32>
    %c0_6 = arith.constant 0 : index
    %11 = memref.load %arg2[%c0_6] : memref<3xf32, #tpu.memory_space<smem>>
    %12 = vector.broadcast %11 : f32 to vector<2x128xf32>
    %13 = arith.addf %10, %12 : vector<2x128xf32>
    %c0_7 = arith.constant 0 : index
    %c0_8 = arith.constant 0 : index
    %c0_9 = arith.constant 0 : index
    %14 = vector.load %arg4[%c0_7, %c0_8, %c0_9] : memref<3x2x128xf32, #tpu.memory_space<vmem>>, vector<1x2x128xf32>
    %15 = vector.shape_cast %14 : vector<1x2x128xf32> to vector<2x128xf32>
    %16 = vector.shape_cast %13 : vector<2x128xf32> to vector<1x2x128xf32>
    tpu.vector_store %arg4[%c0_7, %c0_8, %c0_9], %16 {strides = array<i32>} : memref<3x2x128xf32, #tpu.memory_space<vmem>>, vector<1x2x128xf32>,
    %c2 = arith.constant 2 : index
    %17 = memref.load %arg1[%c2] : memref<6xf32, #tpu.memory_space<smem>>
    %18 = vector.broadcast %17 : f32 to vector<2x128xf32>
    %19 = arith.mulf %18, %1 : vector<2x128xf32>
    %c3 = arith.constant 3 : index
    %20 = memref.load %arg1[%c3] : memref<6xf32, #tpu.memory_space<smem>>
    %21 = vector.broadcast %20 : f32 to vector<2x128xf32>
    %22 = arith.mulf %21, %3 : vector<2x128xf32>
    %23 = arith.addf %19, %22 : vector<2x128xf32>
    %c1_10 = arith.constant 1 : index
    %24 = memref.load %arg2[%c1_10] : memref<3xf32, #tpu.memory_space<smem>>
    %25 = vector.broadcast %24 : f32 to vector<2x128xf32>
    %26 = arith.addf %23, %25 : vector<2x128xf32>
    %c1_11 = arith.constant 1 : index
    %c0_12 = arith.constant 0 : index
    %c0_13 = arith.constant 0 : index
    %27 = vector.load %arg4[%c1_11, %c0_12, %c0_13] : memref<3x2x128xf32, #tpu.memory_space<vmem>>, vector<1x2x128xf32>
    %28 = vector.shape_cast %27 : vector<1x2x128xf32> to vector<2x128xf32>
    %29 = vector.shape_cast %26 : vector<2x128xf32> to vector<1x2x128xf32>
    tpu.vector_store %arg4[%c1_11, %c0_12, %c0_13], %29 {strides = array<i32>} : memref<3x2x128xf32, #tpu.memory_space<vmem>>, vector<1x2x128xf32>,
    %c4 = arith.constant 4 : index
    %30 = memref.load %arg1[%c4] : memref<6xf32, #tpu.memory_space<smem>>
    %31 = vector.broadcast %30 : f32 to vector<2x128xf32>
    %32 = arith.mulf %31, %1 : vector<2x128xf32>
    %c5 = arith.constant 5 : index
    %33 = memref.load %arg1[%c5] : memref<6xf32, #tpu.memory_space<smem>>
    %34 = vector.broadcast %33 : f32 to vector<2x128xf32>
    %35 = arith.mulf %34, %3 : vector<2x128xf32>
    %36 = arith.addf %32, %35 : vector<2x128xf32>
    %c2_14 = arith.constant 2 : index
    %37 = memref.load %arg2[%c2_14] : memref<3xf32, #tpu.memory_space<smem>>
    %38 = vector.broadcast %37 : f32 to vector<2x128xf32>
    %39 = arith.addf %36, %38 : vector<2x128xf32>
    %c2_15 = arith.constant 2 : index
    %c0_16 = arith.constant 0 : index
    %c0_17 = arith.constant 0 : index
    %40 = vector.load %arg4[%c2_15, %c0_16, %c0_17] : memref<3x2x128xf32, #tpu.memory_space<vmem>>, vector<1x2x128xf32>
    %41 = vector.shape_cast %40 : vector<1x2x128xf32> to vector<2x128xf32>
    %42 = vector.shape_cast %39 : vector<2x128xf32> to vector<1x2x128xf32>
    tpu.vector_store %arg4[%c2_15, %c0_16, %c0_17], %42 {strides = array<i32>} : memref<3x2x128xf32, #tpu.memory_space<vmem>>, vector<1x2x128xf32>,
    return
  }
  func.func @transform_0(%arg0: i32) -> i32 {
    %c0_i32 = arith.constant 0 : i32
    %c0_i32_0 = arith.constant 0 : i32
    return %c0_i32 : i32
  }
  func.func @transform_1(%arg0: i32) -> i32 {
    %c0_i32 = arith.constant 0 : i32
    %c0_i32_0 = arith.constant 0 : i32
    return %c0_i32 : i32
  }
  func.func @transform_2(%arg0: i32) -> (i32, i32, i32) {
    %c0_i32 = arith.constant 0 : i32
    %c0_i32_0 = arith.constant 0 : i32
    %c0_i32_1 = arith.constant 0 : i32
    return %c0_i32, %arg0, %c0_i32_0 : i32, i32, i32
  }
  func.func @transform_3(%arg0: i32) -> (i32, i32, i32) {
    %c0_i32 = arith.constant 0 : i32
    %c0_i32_0 = arith.constant 0 : i32
    %c0_i32_1 = arith.constant 0 : i32
    return %c0_i32, %arg0, %c0_i32_0 : i32, i32, i32
  }
}

</mosaic_0001>

<llo_original>
// kernel: tpu_custom_call.1
$region0: #{tpu_custom_call.1}
  #allocation0 [shape = 'u32[]', space=smem, size = 0x4, offset = 0x4, fixed_abs, tag = 'smem constant byte address 0x4 - core index']
  #allocation1 [shape = 'u32[144,128]{1,0:T(1,128)}', space=vmem, size = 0x12000, scoped, tag = 'internal scratch']
  %s0 = inlined_call_operand.hbm [shape: f32[6], index: 0, kind: input, shape index: {}]
  %s1 = inlined_call_operand.vmem [shape: f32[3], index: 1, kind: input, shape index: {}]
  %s2 = inlined_call_operand.vmem [shape: f32[2,2,128], index: 2, kind: input, shape index: {}]
  %s3 = inlined_call_operand.hbm [shape: f32[3,2,128], index: 3, kind: output, shape index: {}]
  %s4 = sld [smem:[#allocation0]]
  $region30: #{tpu_custom_call.1} parent=0
    _
  %s6 = ssub.s32 1, %s4
  %s7 = scalar_select 0, %s6, %s4
  $region1: #{tpu_custom_call.1} parent=0
    #allocation2 [shape = 'u8[512]{0}', space=smem, size = 0x200, scoped, tag = 'input window, operand 0, single buffered']
    #allocation3 [shape = 's32[1]{0}', space=sflag, size = 0x4, scoped, tag = 'scoped memory for tpu_custom_call.1']
    #allocation4 [shape = 's32[1]{0}', space=sflag, size = 0x4, scoped, tag = 'scoped memory for tpu_custom_call.1']
    #allocation5 [shape = 's32[1]{0}', space=sflag, size = 0x4, scoped, tag = 'scoped memory for tpu_custom_call.1']
    #allocation6 [shape = 'u8[512]{0}', space=smem, size = 0x200, scoped, tag = 'input window, operand 1, single buffered']
    #allocation7 [shape = 'u8[3072]{0}', space=vmem, size = 0xc00, scoped, tag = 'output window, operand 0, single buffered']
    %8 = vsyncpa [#allocation4], 0
    %9 = vsyncpa [#allocation5], 0
    %10 = vsyncpa [#allocation3], 0
    // Predicated region
    $region2: #{tpu_custom_call.1} parent=1 // pred_check
      _
    $region3: #{tpu_custom_call.1} parent=1 // pred_check_branch
      %12 = sbr.rel (0) target = $region5
    $region4: #{tpu_custom_call.1} parent=1 // pred_region
      %s14 = ssub.s32 16, 16
      %15 = vsyncadd [#allocation4], %s14
      %18 = dma.hbm_to_smem %s0, 16, [#allocation2], [#allocation4]
    $region5: #{tpu_custom_call.1} parent=1 // pred_fallthru
      _
    // Predicated region
    $region6: #{tpu_custom_call.1} parent=1 // pred_check
      _
    $region7: #{tpu_custom_call.1} parent=1 // pred_check_branch
      %20 = sbr.rel (0) target = $region9
    $region8: #{tpu_custom_call.1} parent=1 // pred_region
      %s22 = ssub.s32 16, 16
      %23 = vsyncadd [#allocation5], %s22
      %s25 = sshll.u32 %s1, 4
      %s26 = int_to_ptr.vmem [resolvable:$true] %s25
      %28 = dma.vmem_to_smem %s26, 16, [#allocation6], [#allocation5]
    $region9: #{tpu_custom_call.1} parent=1 // pred_fallthru
      _
    // Predicated region
    $region10: #{tpu_custom_call.1} parent=1 // pred_check
      _
    $region11: #{tpu_custom_call.1} parent=1 // pred_check_branch
      %30 = sbr.rel (0) target = $region13
    $region12: #{tpu_custom_call.1} parent=1 // pred_region
      _
    $region13: #{tpu_custom_call.1} parent=1 // pred_fallthru
      _
    // Predicated region
    $region14: #{tpu_custom_call.1} parent=1 // pred_check
      _
    $region15: #{tpu_custom_call.1} parent=1 // pred_check_branch
      %32 = sbr.rel (0) target = $region17
    $region16: #{tpu_custom_call.1} parent=1 // pred_region
      %33 = dma.done [#allocation4], 16
    $region17: #{tpu_custom_call.1} parent=1 // pred_fallthru
      _
    // Predicated region
    $region18: #{tpu_custom_call.1} parent=1 // pred_check
      _
    $region19: #{tpu_custom_call.1} parent=1 // pred_check_branch
      %35 = sbr.rel (0) target = $region21
    $region20: #{tpu_custom_call.1} parent=1 // pred_region
      %36 = dma.done [#allocation5], 16
    $region21: #{tpu_custom_call.1} parent=1 // pred_fallthru
      _
    %37 = sfence
    %v38 = vld [vmem:[%s2] sm:$0x3]
    %s39 = scalar_lea.vmem %s2, 2
    %v40 = vld [vmem:[%s39] sm:$0x3]
    %s41 = sld [smem:[#allocation2]]
    %v42 = vstv %s41
    %v43 = vmul.f32 %v42, %v38
    %s44 = sld [smem:[#allocation2 + $0x1]]
    %v45 = vstv %s44
    %v46 = vmul.f32 %v45, %v40
    %v47 = vadd.f32 %v43, %v46
    %s48 = sld [smem:[#allocation6]]
    %v49 = vstv %s48
    %v50 = vadd.f32 %v47, %v49
    %51 = vst [vmem:[#allocation7] sm:$0x3] %v50
    %s52 = sld [smem:[#allocation2 + $0x2]]
    %v53 = vstv %s52
    %v54 = vmul.f32 %v53, %v38
    %s55 = sld [smem:[#allocation2 + $0x3]]
    %v56 = vstv %s55
    %v57 = vmul.f32 %v56, %v40
    %v58 = vadd.f32 %v54, %v57
    %s59 = sld [smem:[#allocation6 + $0x1]]
    %v60 = vstv %s59
    %v61 = vadd.f32 %v58, %v60
    %s62 = scalar_lea.vmem [#allocation7], 2
    %63 = vst [vmem:[%s62] sm:$0x3] %v61
    %s64 = sld [smem:[#allocation2 + $0x4]]
    %v65 = vstv %s64
    %v66 = vmul.f32 %v65, %v38
    %s67 = sld [smem:[#allocation2 + $0x5]]
    %v68 = vstv %s67
    %v69 = vmul.f32 %v68, %v40
    %v70 = vadd.f32 %v66, %v69
    %s71 = sld [smem:[#allocation6 + $0x2]]
    %v72 = vstv %s71
    %v73 = vadd.f32 %v70, %v72
    %s74 = scalar_lea.vmem [#allocation7], 4
    %75 = vst [vmem:[%s74] sm:$0x3] %v73
    // Predicated region
    $region22: #{tpu_custom_call.1} parent=1 // pred_check
      _
    $region23: #{tpu_custom_call.1} parent=1 // pred_check_branch
      %77 = sbr.rel (0) target = $region25
    $region24: #{tpu_custom_call.1} parent=1 // pred_region
      %s79 = ssub.s32 96, 96
      %80 = vsyncadd [#allocation3], %s79
      %s81 = sshll.u32 [#allocation7], 4
      %s82 = int_to_ptr.vmem [resolvable:$true] %s81
      %87 = dma.vmem_to_hbm [thread:$0]  %s82, 96, %s3, [#allocation3], 32, 32, 2
    $region25: #{tpu_custom_call.1} parent=1 // pred_fallthru
      _
    // Predicated region
    $region26: #{tpu_custom_call.1} parent=1 // pred_check
      _
    $region27: #{tpu_custom_call.1} parent=1 // pred_check_branch
      %89 = sbr.rel (0) target = $region29
    $region28: #{tpu_custom_call.1} parent=1 // pred_region
      %90 = dma.done [#allocation3], 96
    $region29: #{tpu_custom_call.1} parent=1 // pred_fallthru
      _
    %91 = vsyncpa [#allocation3], 1
    %92 = vsyncpa [#allocation4], 1
    %93 = vsyncpa [#allocation5], 1

</llo_original>
